<compile_context>
chip_gen: v6e
topology: v6e:2x2x1
jax: 0.10.0
libtpu: 0.0.40
codegen_flags: <defaults>
</compile_context>

<pallas_src>
import functools

import jax
import jax.numpy as jnp
from jax.experimental import pallas as pl
from jax.experimental.pallas import tpu as pltpu

_LANE = 128
_SUBLANE = 8


def _round_up(n, m):
    return ((n + m - 1) // m) * m


def _mlp_kernel(x_ref,
                w1_ref, w2_ref, w3_ref, w4_ref,
                b_ref,               # packed biases: (4, max_pad) f32
                o_ref,
                *, out_pads):
    h1p, h2p, h3p, ncp = out_pads

    # x arrives at its true feature width in its original dtype; cast to bf16 for MXU.
    x = x_ref[...].astype(jnp.bfloat16)

    h = jnp.dot(x, w1_ref[...], preferred_element_type=jnp.float32)
    h = jnp.maximum(h + b_ref[0:1, :h1p], 0.0).astype(jnp.bfloat16)

    h = jnp.dot(h, w2_ref[...], preferred_element_type=jnp.float32)
    h = jnp.maximum(h + b_ref[1:2, :h2p], 0.0).astype(jnp.bfloat16)

    h = jnp.dot(h, w3_ref[...], preferred_element_type=jnp.float32)
    h = jnp.maximum(h + b_ref[2:3, :h3p], 0.0).astype(jnp.bfloat16)

    out = jnp.dot(h, w4_ref[...], preferred_element_type=jnp.float32) + b_ref[3:4, :ncp]
    o_ref[...] = out.astype(o_ref.dtype)


def prepare_params(params):
    """Fold BN into each Linear, pad weight OUT dims to 128 lanes, pack the biases.

    Call this ONCE (outside any per-step jit) - it is pure parameter preprocessing.
    The first weight keeps its true input width (matches x's real feature dim, so no
    padded copy of x is ever needed); subsequent weights' input widths match the
    previous layer's padded output.  Padded rows/cols are zero, so they contribute
    exactly 0 through every layer (ReLU(0) = 0).
    """
    (w1, b1, s1, t1, w2, b2, s2, t2, w3, b3, s3, t3, w4, b4) = params

    folded = []
    for (w, b, s, t) in ((w1, b1, s1, t1), (w2, b2, s2, t2),
                         (w3, b3, s3, t3), (w4, b4, None, None)):
        if s is not None:
            w = w * s                  # scale each output column
            b = b * s + t
        folded.append((w, jnp.reshape(b, (-1,))))

    input_size = folded[0][0].shape[0]
    num_classes = folded[-1][0].shape[1]

    prev_out = input_size              # first layer: true input width, no padding
    weights, biases, out_pads = [], [], []
    for (w, b) in folded:
        din, dout = w.shape
        dout_p = _round_up(dout, _LANE)
        wp = jnp.zeros((prev_out, dout_p), jnp.float32).at[:din, :dout].set(w)
        bp = jnp.zeros((dout_p,), jnp.float32).at[:dout].set(b)
        weights.append(wp.astype(jnp.bfloat16))
        biases.append(bp)
        out_pads.append(dout_p)
        prev_out = dout_p

    max_pad = max(out_pads)
    b_packed = jnp.zeros((len(biases), max_pad), jnp.float32)
    for i, bp in enumerate(biases):
        b_packed = b_packed.at[i, :bp.shape[0]].set(bp)

    return dict(weights=tuple(weights), biases=b_packed, out_pads=tuple(out_pads),
                input_size=input_size, num_classes=num_classes)


def _pick_block_b(B):
    if B <= 256:
        # Small batch: one lane-dense tile covering the whole batch. 16-row alignment
        # (bf16 native (16,128) tile) only when B isn't already a sublane multiple.
        return B if B % _SUBLANE == 0 else _round_up(B, 16)
    # Large batch: at least 2 (even #) grid steps so the 'parallel' batch axis can
    # shard across both v7x TensorCores; tiles capped near 2048 rows (HBM roofline
    # fraction saturates by ~1-2K rows on v5e/v6e, and per-step overhead is ~0.35us).
    n_steps = max(2, 2 * ((B + 2 * 2048 - 1) // (2 * 2048)))
    return _round_up(pl.cdiv(B, n_steps), 16)


def mlp_forward(x, prepared, *, block_b=None):
    """Fused eval-mode MLP forward. x: (B, input_size), f32 or bf16."""
    B, input_size = x.shape
    w1, w2, w3, w4 = prepared["weights"]
    b_packed = prepared["biases"]
    out_pads = prepared["out_pads"]
    num_classes = prepared["num_classes"]
    nc_pad = out_pads[-1]
    assert input_size == prepared["input_size"]

    if block_b is None:
        block_b = _pick_block_b(B)
    block_b = max(_SUBLANE, block_b)
    nb = pl.cdiv(B, block_b)      # partial last block (if any) is masked by Pallas

    def x_map(i):
        return (i, 0)

    def const_map(i):
        return (0, 0)

    in_specs = [pl.BlockSpec((block_b, input_size), x_map)]
    for w in (w1, w2, w3, w4):
        in_specs.append(pl.BlockSpec(w.shape, const_map, pipeline_mode=pl.Buffered(1)))
    in_specs.append(pl.BlockSpec(b_packed.shape, const_map, pipeline_mode=pl.Buffered(1)))
    out_spec = pl.BlockSpec((block_b, nc_pad), x_map)

    h1p, h2p, h3p, _ = out_pads
    weight_bytes = sum(int(w.size) * w.dtype.itemsize for w in (w1, w2, w3, w4))
    bias_bytes = int(b_packed.size) * b_packed.dtype.itemsize
    flops = 2 * B * (input_size * h1p + h1p * h2p + h2p * h3p + h3p * nc_pad)
    bytes_accessed = (int(x.size) * x.dtype.itemsize + weight_bytes + bias_bytes
                      + B * nc_pad * 2)
    cost = pl.CostEstimate(flops=flops, transcendentals=0,
                           bytes_accessed=bytes_accessed)

    # Scoped VMEM budget: resident (single-buffered) weights + double-buffered x/out
    # tiles + f32 intermediates, with headroom. v5e's default scoped limit is 16 MiB,
    # so raise it explicitly; cap at 64 MiB to stay inside v7x's physical VMEM.
    vmem_need = (weight_bytes + bias_bytes
                 + 2 * block_b * (input_size * x.dtype.itemsize + nc_pad * 2)
                 + 6 * block_b * max(out_pads) * 4)
    vmem_limit_bytes = int(min(max(2 * vmem_need, 32 << 20), 64 << 20))

    out_padded = pl.pallas_call(
        functools.partial(_mlp_kernel, out_pads=out_pads),
        out_shape=jax.ShapeDtypeStruct((B, nc_pad), jnp.bfloat16),
        grid_spec=pltpu.PrefetchScalarGridSpec(
            num_scalar_prefetch=0,
            grid=(nb,),
            in_specs=in_specs,
            out_specs=out_spec,
        ),
        compiler_params=pltpu.CompilerParams(
            dimension_semantics=("parallel",),
            vmem_limit_bytes=vmem_limit_bytes),
        cost_estimate=cost,
    )(x, w1, w2, w3, w4, b_packed)

    return out_padded[:, :num_classes].astype(jnp.float32)


def init_params(key, input_size, hidden1, hidden2, hidden3, num_classes, eps=1e-5):
    """Parameters mirroring the PyTorch module (eval mode).

    Linear weights stored as (in, out) (torch weight transposed). BatchNorm1d uses
    torch defaults (running_mean=0, running_var=1, gamma=1, beta=0), expressed as
    scale = gamma / sqrt(var + eps), shift = beta - mean * scale.
    """
    dims = [(input_size, hidden1), (hidden1, hidden2),
            (hidden2, hidden3), (hidden3, num_classes)]
    keys = jax.random.split(key, 2 * len(dims))
    params = []
    for li, (din, dout) in enumerate(dims):
        bound = 1.0 / jnp.sqrt(din)
        w = jax.random.uniform(keys[2 * li], (din, dout), jnp.float32, -bound, bound)
        b = jax.random.uniform(keys[2 * li + 1], (1, dout), jnp.float32, -bound, bound)
        params.append(w)
        params.append(b)
        if li < 3:  # BatchNorm after the first three Linears
            gamma = jnp.ones((1, dout), jnp.float32)
            beta = jnp.zeros((1, dout), jnp.float32)
            running_mean = jnp.zeros((1, dout), jnp.float32)
            running_var = jnp.ones((1, dout), jnp.float32)
            scale = gamma / jnp.sqrt(running_var + eps)
            shift = beta - running_mean * scale
            params.append(scale)
            params.append(shift)
    # TODO(synk): training-mode Dropout masking and BN batch-statistics updates are not
    # implemented (eval-mode forward only; Dropout is identity, BN uses running stats).
    return tuple(params)


def mlp_reference(x, params):
    """Pure-JAX f32 reference of the same eval-mode forward."""
    (w1, b1, s1, t1, w2, b2, s2, t2, w3, b3, s3, t3, w4, b4) = params
    h = jnp.maximum((x @ w1 + b1) * s1 + t1, 0.0)
    h = jnp.maximum((h @ w2 + b2) * s2 + t2, 0.0)
    h = jnp.maximum((h @ w3 + b3) * s3 + t3, 0.0)
    return h @ w4 + b4


if __name__ == "__main__":
    # Small shapes consistent with the module's forward: x is (batch, input_size).
    batch, input_size = 8, 32
    hidden1, hidden2, hidden3, num_classes = 64, 64, 32, 16

    key = jax.random.PRNGKey(0)
    kx, kp = jax.random.split(key)
    x = jax.random.normal(kx, (batch, input_size), jnp.float32)
    params = init_params(kp, input_size, hidden1, hidden2, hidden3, num_classes)

    prepared = prepare_params(params)        # one-time: BN fold + pad + bf16 + bias pack
    out = mlp_forward(x, prepared)
    out = jax.block_until_ready(out)

    ref = mlp_reference(x, params)
    assert out.shape == (batch, num_classes)
    # bf16 MXU inputs / bf16 output store with f32 accumulation -> relaxed tolerance.
    assert jnp.allclose(out, ref, atol=2e-2, rtol=2e-2), "mismatch vs reference"

    print("KERNEL_OK")
</pallas_src>

<mosaic_0001>
module attributes {stable_mosaic.version = 11 : i64} {
  func.func @_mlp_kernel(%arg0: i32, %arg1: memref<8x32xf32, #tpu.memory_space<vmem>>, %arg2: memref<32x128xbf16, #tpu.memory_space<vmem>>, %arg3: memref<128x128xbf16, #tpu.memory_space<vmem>>, %arg4: memref<128x128xbf16, #tpu.memory_space<vmem>>, %arg5: memref<128x128xbf16, #tpu.memory_space<vmem>>, %arg6: memref<4x128xf32, #tpu.memory_space<vmem>>, %arg7: memref<8x128xbf16, #tpu.memory_space<vmem>>) attributes {dimension_semantics = [#tpu.dimension_semantics<parallel>], iteration_bounds = array<i64: 1>, scalar_prefetch = 0 : i64, scratch_operands = 0 : i64, tpu.core_type = #tpu.core_type<tc>, window_params = [{transform_indices = @transform_0, window_bounds = array<i64: 8, 32>}, {pipeline_mode = #tpu.pipeline_mode<synchronous>, transform_indices = @transform_1, window_bounds = array<i64: 32, 128>}, {pipeline_mode = #tpu.pipeline_mode<synchronous>, transform_indices = @transform_2, window_bounds = array<i64: 128, 128>}, {pipeline_mode = #tpu.pipeline_mode<synchronous>, transform_indices = @transform_3, window_bounds = array<i64: 128, 128>}, {pipeline_mode = #tpu.pipeline_mode<synchronous>, transform_indices = @transform_4, window_bounds = array<i64: 128, 128>}, {pipeline_mode = #tpu.pipeline_mode<synchronous>, transform_indices = @transform_5, window_bounds = array<i64: 4, 128>}, {transform_indices = @transform_6, window_bounds = array<i64: 8, 128>}]} {
    %c0 = arith.constant 0 : index
    %c0_0 = arith.constant 0 : index
    %0 = vector.load %arg1[%c0, %c0_0] : memref<8x32xf32, #tpu.memory_space<vmem>>, vector<8x32xf32>
    %1 = arith.truncf %0 : vector<8x32xf32> to vector<8x32xbf16>
    %c0_1 = arith.constant 0 : index
    %c0_2 = arith.constant 0 : index
    %2 = vector.load %arg2[%c0_1, %c0_2] : memref<32x128xbf16, #tpu.memory_space<vmem>>, vector<32x128xbf16>
    %cst = arith.constant dense<0.000000e+00> : vector<8x128xf32>
    %3 = tpu.matmul %1, %2, %cst {dimension_numbers = #tpu.dot_dimension_numbers<[1], [0], [0], [1], [0, 0, 1, 1], [], []>} : vector<8x32xbf16>, vector<32x128xbf16>, vector<8x128xf32> -> vector<8x128xf32>
    %c0_3 = arith.constant 0 : index
    %c0_4 = arith.constant 0 : index
    %4 = vector.load %arg6[%c0_3, %c0_4] : memref<4x128xf32, #tpu.memory_space<vmem>>, vector<1x128xf32>
    %5 = vector.broadcast %4 : vector<1x128xf32> to vector<8x128xf32>
    %6 = arith.addf %3, %5 : vector<8x128xf32>
    %cst_5 = arith.constant 0.000000e+00 : f32
    %7 = vector.broadcast %cst_5 : f32 to vector<8x128xf32>
    %8 = arith.maximumf %6, %7 : vector<8x128xf32>
    %9 = arith.truncf %8 : vector<8x128xf32> to vector<8x128xbf16>
    %c0_6 = arith.constant 0 : index
    %c0_7 = arith.constant 0 : index
    %10 = vector.load %arg3[%c0_6, %c0_7] : memref<128x128xbf16, #tpu.memory_space<vmem>>, vector<128x128xbf16>
    %cst_8 = arith.constant dense<0.000000e+00> : vector<8x128xf32>
    %11 = tpu.matmul %9, %10, %cst_8 {dimension_numbers = #tpu.dot_dimension_numbers<[1], [0], [0], [1], [0, 0, 1, 1], [], []>} : vector<8x128xbf16>, vector<128x128xbf16>, vector<8x128xf32> -> vector<8x128xf32>
    %c1 = arith.constant 1 : index
    %c0_9 = arith.constant 0 : index
    %12 = vector.load %arg6[%c1, %c0_9] : memref<4x128xf32, #tpu.memory_space<vmem>>, vector<1x128xf32>
    %13 = vector.broadcast %12 : vector<1x128xf32> to vector<8x128xf32>
    %14 = arith.addf %11, %13 : vector<8x128xf32>
    %cst_10 = arith.constant 0.000000e+00 : f32
    %15 = vector.broadcast %cst_10 : f32 to vector<8x128xf32>
    %16 = arith.maximumf %14, %15 : vector<8x128xf32>
    %17 = arith.truncf %16 : vector<8x128xf32> to vector<8x128xbf16>
    %c0_11 = arith.constant 0 : index
    %c0_12 = arith.constant 0 : index
    %18 = vector.load %arg4[%c0_11, %c0_12] : memref<128x128xbf16, #tpu.memory_space<vmem>>, vector<128x128xbf16>
    %cst_13 = arith.constant dense<0.000000e+00> : vector<8x128xf32>
    %19 = tpu.matmul %17, %18, %cst_13 {dimension_numbers = #tpu.dot_dimension_numbers<[1], [0], [0], [1], [0, 0, 1, 1], [], []>} : vector<8x128xbf16>, vector<128x128xbf16>, vector<8x128xf32> -> vector<8x128xf32>
    %c2 = arith.constant 2 : index
    %c0_14 = arith.constant 0 : index
    %20 = vector.load %arg6[%c2, %c0_14] : memref<4x128xf32, #tpu.memory_space<vmem>>, vector<1x128xf32>
    %21 = vector.broadcast %20 : vector<1x128xf32> to vector<8x128xf32>
    %22 = arith.addf %19, %21 : vector<8x128xf32>
    %cst_15 = arith.constant 0.000000e+00 : f32
    %23 = vector.broadcast %cst_15 : f32 to vector<8x128xf32>
    %24 = arith.maximumf %22, %23 : vector<8x128xf32>
    %25 = arith.truncf %24 : vector<8x128xf32> to vector<8x128xbf16>
    %c0_16 = arith.constant 0 : index
    %c0_17 = arith.constant 0 : index
    %26 = vector.load %arg5[%c0_16, %c0_17] : memref<128x128xbf16, #tpu.memory_space<vmem>>, vector<128x128xbf16>
    %cst_18 = arith.constant dense<0.000000e+00> : vector<8x128xf32>
    %27 = tpu.matmul %25, %26, %cst_18 {dimension_numbers = #tpu.dot_dimension_numbers<[1], [0], [0], [1], [0, 0, 1, 1], [], []>} : vector<8x128xbf16>, vector<128x128xbf16>, vector<8x128xf32> -> vector<8x128xf32>
    %c3 = arith.constant 3 : index
    %c0_19 = arith.constant 0 : index
    %28 = vector.load %arg6[%c3, %c0_19] : memref<4x128xf32, #tpu.memory_space<vmem>>, vector<1x128xf32>
    %29 = vector.broadcast %28 : vector<1x128xf32> to vector<8x128xf32>
    %30 = arith.addf %27, %29 : vector<8x128xf32>
    %31 = arith.truncf %30 : vector<8x128xf32> to vector<8x128xbf16>
    %c0_20 = arith.constant 0 : index
    %c0_21 = arith.constant 0 : index
    %32 = vector.load %arg7[%c0_20, %c0_21] : memref<8x128xbf16, #tpu.memory_space<vmem>>, vector<8x128xbf16>
    tpu.vector_store %arg7[%c0_20, %c0_21], %31 {strides = array<i32>} : memref<8x128xbf16, #tpu.memory_space<vmem>>, vector<8x128xbf16>,
    return
  }
  func.func @transform_0(%arg0: i32) -> (i32, i32) {
    %c0_i32 = arith.constant 0 : i32
    %c0_i32_0 = arith.constant 0 : i32
    return %arg0, %c0_i32 : i32, i32
  }
  func.func @transform_1(%arg0: i32) -> (i32, i32) {
    %c0_i32 = arith.constant 0 : i32
    %c0_i32_0 = arith.constant 0 : i32
    %c0_i32_1 = arith.constant 0 : i32
    return %c0_i32, %c0_i32_0 : i32, i32
  }
  func.func @transform_2(%arg0: i32) -> (i32, i32) {
    %c0_i32 = arith.constant 0 : i32
    %c0_i32_0 = arith.constant 0 : i32
    %c0_i32_1 = arith.constant 0 : i32
    return %c0_i32, %c0_i32_0 : i32, i32
  }
  func.func @transform_3(%arg0: i32) -> (i32, i32) {
    %c0_i32 = arith.constant 0 : i32
    %c0_i32_0 = arith.constant 0 : i32
    %c0_i32_1 = arith.constant 0 : i32
    return %c0_i32, %c0_i32_0 : i32, i32
  }
  func.func @transform_4(%arg0: i32) -> (i32, i32) {
    %c0_i32 = arith.constant 0 : i32
    %c0_i32_0 = arith.constant 0 : i32
    %c0_i32_1 = arith.constant 0 : i32
    return %c0_i32, %c0_i32_0 : i32, i32
  }
  func.func @transform_5(%arg0: i32) -> (i32, i32) {
    %c0_i32 = arith.constant 0 : i32
    %c0_i32_0 = arith.constant 0 : i32
    %c0_i32_1 = arith.constant 0 : i32
    return %c0_i32, %c0_i32_0 : i32, i32
  }
  func.func @transform_6(%arg0: i32) -> (i32, i32) {
    %c0_i32 = arith.constant 0 : i32
    %c0_i32_0 = arith.constant 0 : i32
    return %arg0, %c0_i32 : i32, i32
  }
}

</mosaic_0001>

<llo_original>
// kernel: tpu_custom_call.1
$region0: #{tpu_custom_call.1}
  #allocation0 [shape = 'u32[]', space=smem, size = 0x4, offset = 0x4, fixed_abs, tag = 'smem constant byte address 0x4 - core index']
  #allocation1 [shape = 'u32[144,128]{1,0:T(1,128)}', space=vmem, size = 0x12000, scoped, tag = 'internal scratch']
  %s0 = inlined_call_operand.hbm [shape: f32[8,32], index: 0, kind: input, shape index: {}]
  %s1 = inlined_call_operand.hbm [shape: bf16[32,128], index: 1, kind: input, shape index: {}]
  %s2 = inlined_call_operand.hbm [shape: bf16[128,128], index: 2, kind: input, shape index: {}]
  %s3 = inlined_call_operand.hbm [shape: bf16[128,128], index: 3, kind: input, shape index: {}]
  %s4 = inlined_call_operand.hbm [shape: bf16[128,128], index: 4, kind: input, shape index: {}]
  %s5 = inlined_call_operand.vmem [shape: f32[4,128], index: 5, kind: input, shape index: {}]
  %s6 = inlined_call_operand.hbm [shape: bf16[8,128], index: 6, kind: output, shape index: {}]
  %s7 = sld [smem:[#allocation0]]
  $region54: #{tpu_custom_call.1} parent=0
    _
  %s9 = ssub.s32 1, %s7
  %s10 = scalar_select 0, %s9, %s7
  $region1: #{tpu_custom_call.1} parent=0
    #allocation2 [shape = 'u8[4096]{0}', space=vmem, size = 0x1000, scoped, tag = 'input window, operand 0, single buffered']
    #allocation3 [shape = 's32[1]{0}', space=sflag, size = 0x4, scoped, tag = 'scoped memory for tpu_custom_call.1']
    #allocation4 [shape = 's32[1]{0}', space=sflag, size = 0x4, scoped, tag = 'scoped memory for tpu_custom_call.1']
    #allocation5 [shape = 'u8[8192]{0}', space=vmem, size = 0x2000, scoped, tag = 'input window, operand 1, single buffered']
    #allocation6 [shape = 's32[1]{0}', space=sflag, size = 0x4, scoped, tag = 'scoped memory for tpu_custom_call.1']
    #allocation7 [shape = 'u8[32768]{0}', space=vmem, size = 0x8000, scoped, tag = 'input window, operand 2, single buffered']
    #allocation8 [shape = 'u8[32768]{0}', space=vmem, size = 0x8000, scoped, tag = 'input window, operand 3, single buffered']
    #allocation9 [shape = 's32[1]{0}', space=sflag, size = 0x4, scoped, tag = 'scoped memory for tpu_custom_call.1']
    #allocation10 [shape = 'u8[32768]{0}', space=vmem, size = 0x8000, scoped, tag = 'input window, operand 4, single buffered']
    #allocation11 [shape = 'u8[2048]{0}', space=vmem, size = 0x800, scoped, tag = 'output window, operand 0, single buffered']
    %11 = vsyncpa [#allocation3], 0
    %12 = vsyncpa [#allocation6], 0
    %13 = vsyncpa [#allocation9], 0
    %14 = vsyncpa [#allocation4], 0
    // Predicated region
    $region2: #{tpu_custom_call.1} parent=1 // pred_check
      _
    $region3: #{tpu_custom_call.1} parent=1 // pred_check_branch
      %16 = sbr.rel (0) target = $region5
    $region4: #{tpu_custom_call.1} parent=1 // pred_region
      %s18 = ssub.s32 128, 128
      %19 = vsyncadd [#allocation3], %s18
      %s21 = sshll.u32 [#allocation2], 4
      %s22 = int_to_ptr.vmem [resolvable:$true] %s21
      %24 = dma.hbm_to_vmem [thread:$0]  %s0, 128, %s22, [#allocation3]
    $region5: #{tpu_custom_call.1} parent=1 // pred_fallthru
      _
    // Predicated region
    $region6: #{tpu_custom_call.1} parent=1 // pred_check
      _
    $region7: #{tpu_custom_call.1} parent=1 // pred_check_branch
      %26 = sbr.rel (0) target = $region9
    $region8: #{tpu_custom_call.1} parent=1 // pred_region
      %s28 = ssub.s32 256, 256
      %29 = vsyncadd [#allocation6], %s28
      %s30 = sshll.u32 [#allocation5], 4
      %s31 = int_to_ptr.vmem [resolvable:$true] %s30
      %36 = dma.hbm_to_vmem [thread:$0]  %s1, 256, %s31, [#allocation6], 64, 64, 4
    $region9: #{tpu_custom_call.1} parent=1 // pred_fallthru
      _
    // Predicated region
    $region10: #{tpu_custom_call.1} parent=1 // pred_check
      _
    $region11: #{tpu_custom_call.1} parent=1 // pred_check_branch
      %38 = sbr.rel (0) target = $region13
    $region12: #{tpu_custom_call.1} parent=1 // pred_region
      %s40 = ssub.s32 1024, 1024
      %41 = vsyncadd [#allocation6], %s40
      %s42 = sshll.u32 [#allocation7], 4
      %s43 = int_to_ptr.vmem [resolvable:$true] %s42
      %48 = dma.hbm_to_vmem [thread:$0]  %s2, 1024, %s43, [#allocation6], 64, 64, 4
    $region13: #{tpu_custom_call.1} parent=1 // pred_fallthru
      _
    // Predicated region
    $region14: #{tpu_custom_call.1} parent=1 // pred_check
      _
    $region15: #{tpu_custom_call.1} parent=1 // pred_check_branch
      %50 = sbr.rel (0) target = $region17
    $region16: #{tpu_custom_call.1} parent=1 // pred_region
      %s52 = ssub.s32 1024, 1024
      %53 = vsyncadd [#allocation9], %s52
      %s54 = sshll.u32 [#allocation8], 4
      %s55 = int_to_ptr.vmem [resolvable:$true] %s54
      %60 = dma.hbm_to_vmem [thread:$0]  %s3, 1024, %s55, [#allocation9], 64, 64, 4
    $region17: #{tpu_custom_call.1} parent=1 // pred_fallthru
      _
    // Predicated region
    $region18: #{tpu_custom_call.1} parent=1 // pred_check
      _
    $region19: #{tpu_custom_call.1} parent=1 // pred_check_branch
      %62 = sbr.rel (0) target = $region21
    $region20: #{tpu_custom_call.1} parent=1 // pred_region
      %s64 = ssub.s32 1024, 1024
      %65 = vsyncadd [#allocation9], %s64
      %s66 = sshll.u32 [#allocation10], 4
      %s67 = int_to_ptr.vmem [resolvable:$true] %s66
      %72 = dma.hbm_to_vmem [thread:$0]  %s4, 1024, %s67, [#allocation9], 64, 64, 4
    $region21: #{tpu_custom_call.1} parent=1 // pred_fallthru
      _
    // Predicated region
    $region22: #{tpu_custom_call.1} parent=1 // pred_check
      _
    $region23: #{tpu_custom_call.1} parent=1 // pred_check_branch
      %74 = sbr.rel (0) target = $region25
    $region24: #{tpu_custom_call.1} parent=1 // pred_region
      _
    $region25: #{tpu_custom_call.1} parent=1 // pred_fallthru
      _
    // Predicated region
    $region26: #{tpu_custom_call.1} parent=1 // pred_check
      _
    $region27: #{tpu_custom_call.1} parent=1 // pred_check_branch
      %76 = sbr.rel (0) target = $region29
    $region28: #{tpu_custom_call.1} parent=1 // pred_region
      %77 = dma.done [#allocation3], 128
    $region29: #{tpu_custom_call.1} parent=1 // pred_fallthru
      _
    // Predicated region
    $region30: #{tpu_custom_call.1} parent=1 // pred_check
      _
    $region31: #{tpu_custom_call.1} parent=1 // pred_check_branch
      %79 = sbr.rel (0) target = $region33
    $region32: #{tpu_custom_call.1} parent=1 // pred_region
      %80 = dma.done [#allocation6], 256
    $region33: #{tpu_custom_call.1} parent=1 // pred_fallthru
      _
    // Predicated region
    $region34: #{tpu_custom_call.1} parent=1 // pred_check
      _
    $region35: #{tpu_custom_call.1} parent=1 // pred_check_branch
      %82 = sbr.rel (0) target = $region37
    $region36: #{tpu_custom_call.1} parent=1 // pred_region
      %83 = dma.done [#allocation6], 1024
    $region37: #{tpu_custom_call.1} parent=1 // pred_fallthru
      _
    // Predicated region
    $region38: #{tpu_custom_call.1} parent=1 // pred_check
      _
    $region39: #{tpu_custom_call.1} parent=1 // pred_check_branch
      %85 = sbr.rel (0) target = $region41
    $region40: #{tpu_custom_call.1} parent=1 // pred_region
      %86 = dma.done [#allocation9], 1024
    $region41: #{tpu_custom_call.1} parent=1 // pred_fallthru
      _
    // Predicated region
    $region42: #{tpu_custom_call.1} parent=1 // pred_check
      _
    $region43: #{tpu_custom_call.1} parent=1 // pred_check_branch
      %88 = sbr.rel (0) target = $region45
    $region44: #{tpu_custom_call.1} parent=1 // pred_region
      %89 = dma.done [#allocation9], 1024
    $region45: #{tpu_custom_call.1} parent=1 // pred_fallthru
      _
    %v91 = vld [vmem:[#allocation2] sm:$0xff]
    %v92 = vpack.c.bf16 %v91, %v91
    %v93 = vld [vmem:[#allocation5] sm:$0xf]
    %v94 = vld [vmem:[#allocation5 + $0x4] sm:$0xf]
    %v95 = vld [vmem:[#allocation5 + $0x8] sm:$0xf]
    %v96 = vld [vmem:[#allocation5 + $0xc] sm:$0xf]
    %v97 = vld [vmem:[%s5] sm:$0x1]
    %v98 = vlaneseq
    %v99 = vshrl.u32 %v98, 7
    %v100 = vsub.s32 0, %v99
    %v101 = vrot.slane %v97, %v100
    %v106 = vunpack.c.l.b16 %v93
    %v107 = vunpack.c.l.b16 %v94
    %v108 = vunpack.c.l.b16 %v95
    %v109 = vunpack.c.l.b16 %v96
    %v110 = vpack.c.b16 %v107, %v106
    %v111 = vpack.c.b16 %v109, %v108
    %vm114 = vcmask 261120
    %v116 = vsel %vm114, %v92, 0
    %118 = vmatprep.subr.bf16.mxu0 0
    %119 = vmatpush1.bf16.msra.mxu0 0
    %120 = vmatprep.subr.bf16.mxu0 0
    %121 = vmatpush1.bf16.msra.mxu0 0
    %122 = vmatprep.subr.bf16.mxu0 0
    %123 = vmatpush1.bf16.msra.mxu0 0
    %124 = vmatprep.subr.bf16.mxu0 0
    %125 = vmatpush1.bf16.msra.mxu0 0
    %126 = vmatprep.subr.bf16.mxu0 0
    %127 = vmatpush1.bf16.msra.mxu0 0
    %128 = vmatprep.subr.bf16.mxu0 0
    %129 = vmatpush1.bf16.msra.mxu0 0
    %130 = vmatprep.subr.bf16.mxu0 0
    %131 = vmatpush1.bf16.msra.mxu0 %v111
    %132 = vmatprep.subr.bf16.mxu0 0
    %133 = vmatpush1.bf16.msra.mxu0 %v110
    %134 = vmatprep.subr.bf16.mxu0 0
    %135 = vmatpush2.bf16.msra.mxu0 0
    %136 = vmatprep.subr.bf16.mxu0 0
    %137 = vmatpush2.bf16.msra.mxu0 0
    %138 = vmatprep.subr.bf16.mxu0 0
    %139 = vmatpush2.bf16.msra.mxu0 0
    %140 = vmatprep.subr.bf16.mxu0 0
    %141 = vmatpush2.bf16.msra.mxu0 0
    %142 = vmatprep.subr.bf16.mxu0 0
    %143 = vmatpush2.bf16.msra.mxu0 0
    %144 = vmatprep.subr.bf16.mxu0 0
    %145 = vmatpush2.bf16.msra.mxu0 0
    %146 = vmatprep.subr.bf16.mxu0 0
    %147 = vmatpush2.bf16.msra.mxu0 0
    %148 = vmatprep.subr.bf16.mxu0 0
    %149 = vmatpush2.bf16.msra.mxu0 0
    %150 = vmatprep.mubr.bf16.mxu0 0
    %151 = vmatmul.mubr.bf16.gmra.mxu0 %v116
    %v152 = vpop.f32.mrf.mxu0
    %v153 = vadd.f32 %v101, %v152
    %v154 = vpop.f32.mrf.mxu0
    %v155 = vpop.f32.mrf.mxu0
    %v156 = vpop.f32.mrf.mxu0
    %157 = vdwg.mxu0
    %v158 = vmax.f32 %v153, 0.0
    %v159 = vpack.c.bf16 %v158, %v158
    %v160 = vld [vmem:[#allocation7] sm:$0xf]
    %v161 = vld [vmem:[#allocation7 + $0x4] sm:$0xf]
    %v162 = vld [vmem:[#allocation7 + $0x8] sm:$0xf]
    %v163 = vld [vmem:[#allocation7 + $0xc] sm:$0xf]
    %v164 = vld [vmem:[#allocation7 + $0x10] sm:$0xf]
    %v165 = vld [vmem:[#allocation7 + $0x14] sm:$0xf]
    %v166 = vld [vmem:[#allocation7 + $0x18] sm:$0xf]
    %v167 = vld [vmem:[#allocation7 + $0x1c] sm:$0xf]
    %v168 = vld [vmem:[#allocation7 + $0x20] sm:$0xf]
    %v169 = vld [vmem:[#allocation7 + $0x24] sm:$0xf]
    %v170 = vld [vmem:[#allocation7 + $0x28] sm:$0xf]
    %v171 = vld [vmem:[#allocation7 + $0x2c] sm:$0xf]
    %v172 = vld [vmem:[#allocation7 + $0x30] sm:$0xf]
    %v173 = vld [vmem:[#allocation7 + $0x34] sm:$0xf]
    %v174 = vld [vmem:[#allocation7 + $0x38] sm:$0xf]
    %v175 = vld [vmem:[#allocation7 + $0x3c] sm:$0xf]
    %v176 = vld [vmem:[%s5 + $0x1] sm:$0x1]
    %v177 = vlaneseq
    %v178 = vshrl.u32 %v177, 7
    %v179 = vsub.s32 0, %v178
    %v180 = vrot.slane %v176, %v179
    %v197 = vunpack.c.l.b16 %v160
    %v198 = vunpack.c.l.b16 %v161
    %v199 = vunpack.c.l.b16 %v162
    %v200 = vunpack.c.l.b16 %v163
    %v201 = vunpack.c.l.b16 %v164
    %v202 = vunpack.c.l.b16 %v165
    %v203 = vunpack.c.l.b16 %v166
    %v204 = vunpack.c.l.b16 %v167
    %v205 = vunpack.c.l.b16 %v168
    %v206 = vunpack.c.l.b16 %v169
    %v207 = vunpack.c.l.b16 %v170
    %v208 = vunpack.c.l.b16 %v171
    %v209 = vunpack.c.l.b16 %v172
    %v210 = vunpack.c.l.b16 %v173
    %v211 = vunpack.c.l.b16 %v174
    %v212 = vunpack.c.l.b16 %v175
    %v213 = vpack.c.b16 %v198, %v197
    %v214 = vpack.c.b16 %v200, %v199
    %v215 = vpack.c.b16 %v202, %v201
    %v216 = vpack.c.b16 %v204, %v203
    %v217 = vpack.c.b16 %v206, %v205
    %v218 = vpack.c.b16 %v208, %v207
    %v219 = vpack.c.b16 %v210, %v209
    %v220 = vpack.c.b16 %v212, %v211
    %229 = vmatprep.subr.bf16.mxu0 0
    %230 = vmatpush1.bf16.msra.mxu0 %v220
    %231 = vmatprep.subr.bf16.mxu0 0
    %232 = vmatpush1.bf16.msra.mxu0 %v219
    %233 = vmatprep.subr.bf16.mxu0 0
    %234 = vmatpush1.bf16.msra.mxu0 %v218
    %235 = vmatprep.subr.bf16.mxu0 0
    %236 = vmatpush1.bf16.msra.mxu0 %v217
    %237 = vmatprep.subr.bf16.mxu0 0
    %238 = vmatpush1.bf16.msra.mxu0 %v216
    %239 = vmatprep.subr.bf16.mxu0 0
    %240 = vmatpush1.bf16.msra.mxu0 %v215
    %241 = vmatprep.subr.bf16.mxu0 0
    %242 = vmatpush1.bf16.msra.mxu0 %v214
    %243 = vmatprep.subr.bf16.mxu0 0
    %244 = vmatpush1.bf16.msra.mxu0 %v213
    %245 = vmatprep.subr.bf16.mxu0 0
    %246 = vmatpush2.bf16.msra.mxu0 0
    %247 = vmatprep.subr.bf16.mxu0 0
    %248 = vmatpush2.bf16.msra.mxu0 0
    %249 = vmatprep.subr.bf16.mxu0 0
    %250 = vmatpush2.bf16.msra.mxu0 0
    %251 = vmatprep.subr.bf16.mxu0 0
    %252 = vmatpush2.bf16.msra.mxu0 0
    %253 = vmatprep.subr.bf16.mxu0 0
    %254 = vmatpush2.bf16.msra.mxu0 0
    %255 = vmatprep.subr.bf16.mxu0 0
    %256 = vmatpush2.bf16.msra.mxu0 0
    %257 = vmatprep.subr.bf16.mxu0 0
    %258 = vmatpush2.bf16.msra.mxu0 0
    %259 = vmatprep.subr.bf16.mxu0 0
    %260 = vmatpush2.bf16.msra.mxu0 0
    %261 = vmatprep.mubr.bf16.mxu0 0
    %262 = vmatmul.mubr.bf16.gmra.mxu0 %v159
    %v263 = vpop.f32.mrf.mxu0
    %v264 = vadd.f32 %v180, %v263
    %v265 = vpop.f32.mrf.mxu0
    %v266 = vpop.f32.mrf.mxu0
    %v267 = vpop.f32.mrf.mxu0
    %268 = vdwg.mxu0
    %v269 = vmax.f32 %v264, 0.0
    %v270 = vpack.c.bf16 %v269, %v269
    %v271 = vld [vmem:[#allocation8] sm:$0xf]
    %v272 = vld [vmem:[#allocation8 + $0x4] sm:$0xf]
    %v273 = vld [vmem:[#allocation8 + $0x8] sm:$0xf]
    %v274 = vld [vmem:[#allocation8 + $0xc] sm:$0xf]
    %v275 = vld [vmem:[#allocation8 + $0x10] sm:$0xf]
    %v276 = vld [vmem:[#allocation8 + $0x14] sm:$0xf]
    %v277 = vld [vmem:[#allocation8 + $0x18] sm:$0xf]
    %v278 = vld [vmem:[#allocation8 + $0x1c] sm:$0xf]
    %v279 = vld [vmem:[#allocation8 + $0x20] sm:$0xf]
    %v280 = vld [vmem:[#allocation8 + $0x24] sm:$0xf]
    %v281 = vld [vmem:[#allocation8 + $0x28] sm:$0xf]
    %v282 = vld [vmem:[#allocation8 + $0x2c] sm:$0xf]
    %v283 = vld [vmem:[#allocation8 + $0x30] sm:$0xf]
    %v284 = vld [vmem:[#allocation8 + $0x34] sm:$0xf]
    %v285 = vld [vmem:[#allocation8 + $0x38] sm:$0xf]
    %v286 = vld [vmem:[#allocation8 + $0x3c] sm:$0xf]
    %v287 = vld [vmem:[%s5 + $0x2] sm:$0x1]
    %v288 = vlaneseq
    %v289 = vshrl.u32 %v288, 7
    %v290 = vsub.s32 0, %v289
    %v291 = vrot.slane %v287, %v290
    %v308 = vunpack.c.l.b16 %v271
    %v309 = vunpack.c.l.b16 %v272
    %v310 = vunpack.c.l.b16 %v273
    %v311 = vunpack.c.l.b16 %v274
    %v312 = vunpack.c.l.b16 %v275
    %v313 = vunpack.c.l.b16 %v276
    %v314 = vunpack.c.l.b16 %v277
    %v315 = vunpack.c.l.b16 %v278
    %v316 = vunpack.c.l.b16 %v279
    %v317 = vunpack.c.l.b16 %v280
    %v318 = vunpack.c.l.b16 %v281
    %v319 = vunpack.c.l.b16 %v282
    %v320 = vunpack.c.l.b16 %v283
    %v321 = vunpack.c.l.b16 %v284
    %v322 = vunpack.c.l.b16 %v285
    %v323 = vunpack.c.l.b16 %v286
    %v324 = vpack.c.b16 %v309, %v308
    %v325 = vpack.c.b16 %v311, %v310
    %v326 = vpack.c.b16 %v313, %v312
    %v327 = vpack.c.b16 %v315, %v314
    %v328 = vpack.c.b16 %v317, %v316
    %v329 = vpack.c.b16 %v319, %v318
    %v330 = vpack.c.b16 %v321, %v320
    %v331 = vpack.c.b16 %v323, %v322
    %340 = vmatprep.subr.bf16.mxu0 0
    %341 = vmatpush1.bf16.msra.mxu0 %v331
    %342 = vmatprep.subr.bf16.mxu0 0
    %343 = vmatpush1.bf16.msra.mxu0 %v330
    %344 = vmatprep.subr.bf16.mxu0 0
    %345 = vmatpush1.bf16.msra.mxu0 %v329
    %346 = vmatprep.subr.bf16.mxu0 0
    %347 = vmatpush1.bf16.msra.mxu0 %v328
    %348 = vmatprep.subr.bf16.mxu0 0
    %349 = vmatpush1.bf16.msra.mxu0 %v327
    %350 = vmatprep.subr.bf16.mxu0 0
    %351 = vmatpush1.bf16.msra.mxu0 %v326
    %352 = vmatprep.subr.bf16.mxu0 0
    %353 = vmatpush1.bf16.msra.mxu0 %v325
    %354 = vmatprep.subr.bf16.mxu0 0
    %355 = vmatpush1.bf16.msra.mxu0 %v324
    %356 = vmatprep.subr.bf16.mxu0 0
    %357 = vmatpush2.bf16.msra.mxu0 0
    %358 = vmatprep.subr.bf16.mxu0 0
    %359 = vmatpush2.bf16.msra.mxu0 0
    %360 = vmatprep.subr.bf16.mxu0 0
    %361 = vmatpush2.bf16.msra.mxu0 0
    %362 = vmatprep.subr.bf16.mxu0 0
    %363 = vmatpush2.bf16.msra.mxu0 0
    %364 = vmatprep.subr.bf16.mxu0 0
    %365 = vmatpush2.bf16.msra.mxu0 0
    %366 = vmatprep.subr.bf16.mxu0 0
    %367 = vmatpush2.bf16.msra.mxu0 0
    %368 = vmatprep.subr.bf16.mxu0 0
    %369 = vmatpush2.bf16.msra.mxu0 0
    %370 = vmatprep.subr.bf16.mxu0 0
    %371 = vmatpush2.bf16.msra.mxu0 0
    %372 = vmatprep.mubr.bf16.mxu0 0
    %373 = vmatmul.mubr.bf16.gmra.mxu0 %v270
    %v374 = vpop.f32.mrf.mxu0
    %v375 = vadd.f32 %v291, %v374
    %v376 = vpop.f32.mrf.mxu0
    %v377 = vpop.f32.mrf.mxu0
    %v378 = vpop.f32.mrf.mxu0
    %379 = vdwg.mxu0
    %v380 = vmax.f32 %v375, 0.0
    %v381 = vpack.c.bf16 %v380, %v380
    %v382 = vld [vmem:[#allocation10] sm:$0xf]
    %v383 = vld [vmem:[#allocation10 + $0x4] sm:$0xf]
    %v384 = vld [vmem:[#allocation10 + $0x8] sm:$0xf]
    %v385 = vld [vmem:[#allocation10 + $0xc] sm:$0xf]
    %v386 = vld [vmem:[#allocation10 + $0x10] sm:$0xf]
    %v387 = vld [vmem:[#allocation10 + $0x14] sm:$0xf]
    %v388 = vld [vmem:[#allocation10 + $0x18] sm:$0xf]
    %v389 = vld [vmem:[#allocation10 + $0x1c] sm:$0xf]
    %v390 = vld [vmem:[#allocation10 + $0x20] sm:$0xf]
    %v391 = vld [vmem:[#allocation10 + $0x24] sm:$0xf]
    %v392 = vld [vmem:[#allocation10 + $0x28] sm:$0xf]
    %v393 = vld [vmem:[#allocation10 + $0x2c] sm:$0xf]
    %v394 = vld [vmem:[#allocation10 + $0x30] sm:$0xf]
    %v395 = vld [vmem:[#allocation10 + $0x34] sm:$0xf]
    %v396 = vld [vmem:[#allocation10 + $0x38] sm:$0xf]
    %v397 = vld [vmem:[#allocation10 + $0x3c] sm:$0xf]
    %v398 = vld [vmem:[%s5 + $0x3] sm:$0x1]
    %v399 = vlaneseq
    %v400 = vshrl.u32 %v399, 7
    %v401 = vsub.s32 0, %v400
    %v402 = vrot.slane %v398, %v401
    %v419 = vunpack.c.l.b16 %v382
    %v420 = vunpack.c.l.b16 %v383
    %v421 = vunpack.c.l.b16 %v384
    %v422 = vunpack.c.l.b16 %v385
    %v423 = vunpack.c.l.b16 %v386
    %v424 = vunpack.c.l.b16 %v387
    %v425 = vunpack.c.l.b16 %v388
    %v426 = vunpack.c.l.b16 %v389
    %v427 = vunpack.c.l.b16 %v390
    %v428 = vunpack.c.l.b16 %v391
    %v429 = vunpack.c.l.b16 %v392
    %v430 = vunpack.c.l.b16 %v393
    %v431 = vunpack.c.l.b16 %v394
    %v432 = vunpack.c.l.b16 %v395
    %v433 = vunpack.c.l.b16 %v396
    %v434 = vunpack.c.l.b16 %v397
    %v435 = vpack.c.b16 %v420, %v419
    %v436 = vpack.c.b16 %v422, %v421
    %v437 = vpack.c.b16 %v424, %v423
    %v438 = vpack.c.b16 %v426, %v425
    %v439 = vpack.c.b16 %v428, %v427
    %v440 = vpack.c.b16 %v430, %v429
    %v441 = vpack.c.b16 %v432, %v431
    %v442 = vpack.c.b16 %v434, %v433
    %451 = vmatprep.subr.bf16.mxu0 0
    %452 = vmatpush1.bf16.msra.mxu0 %v442
    %453 = vmatprep.subr.bf16.mxu0 0
    %454 = vmatpush1.bf16.msra.mxu0 %v441
    %455 = vmatprep.subr.bf16.mxu0 0
    %456 = vmatpush1.bf16.msra.mxu0 %v440
    %457 = vmatprep.subr.bf16.mxu0 0
    %458 = vmatpush1.bf16.msra.mxu0 %v439
    %459 = vmatprep.subr.bf16.mxu0 0
    %460 = vmatpush1.bf16.msra.mxu0 %v438
    %461 = vmatprep.subr.bf16.mxu0 0
    %462 = vmatpush1.bf16.msra.mxu0 %v437
    %463 = vmatprep.subr.bf16.mxu0 0
    %464 = vmatpush1.bf16.msra.mxu0 %v436
    %465 = vmatprep.subr.bf16.mxu0 0
    %466 = vmatpush1.bf16.msra.mxu0 %v435
    %467 = vmatprep.subr.bf16.mxu0 0
    %468 = vmatpush2.bf16.msra.mxu0 0
    %469 = vmatprep.subr.bf16.mxu0 0
    %470 = vmatpush2.bf16.msra.mxu0 0
    %471 = vmatprep.subr.bf16.mxu0 0
    %472 = vmatpush2.bf16.msra.mxu0 0
    %473 = vmatprep.subr.bf16.mxu0 0
    %474 = vmatpush2.bf16.msra.mxu0 0
    %475 = vmatprep.subr.bf16.mxu0 0
    %476 = vmatpush2.bf16.msra.mxu0 0
    %477 = vmatprep.subr.bf16.mxu0 0
    %478 = vmatpush2.bf16.msra.mxu0 0
    %479 = vmatprep.subr.bf16.mxu0 0
    %480 = vmatpush2.bf16.msra.mxu0 0
    %481 = vmatprep.subr.bf16.mxu0 0
    %482 = vmatpush2.bf16.msra.mxu0 0
    %483 = vmatprep.mubr.bf16.mxu0 0
    %484 = vmatmul.mubr.bf16.gmra.mxu0 %v381
    %v485 = vpop.f32.mrf.mxu0
    %v486 = vadd.f32 %v402, %v485
    %v487 = vpop.f32.mrf.mxu0
    %v488 = vpop.f32.mrf.mxu0
    %v489 = vpop.f32.mrf.mxu0
    %490 = vdwg.mxu0
    %v491 = vpack.c.bf16 %v486, %v486
    %492 = vst [vmem:[#allocation11] sm:$0xf] %v491
    // Predicated region
    $region46: #{tpu_custom_call.1} parent=1 // pred_check
      _
    $region47: #{tpu_custom_call.1} parent=1 // pred_check_branch
      %494 = sbr.rel (0) target = $region49
    $region48: #{tpu_custom_call.1} parent=1 // pred_region
      %s496 = ssub.s32 64, 64
      %497 = vsyncadd [#allocation4], %s496
      %s499 = sshll.u32 [#allocation11], 4
      %s500 = int_to_ptr.vmem [resolvable:$true] %s499
      %502 = dma.vmem_to_hbm [thread:$0]  %s500, 64, %s6, [#allocation4]
    $region49: #{tpu_custom_call.1} parent=1 // pred_fallthru
      _
    // Predicated region
    $region50: #{tpu_custom_call.1} parent=1 // pred_check
      _
    $region51: #{tpu_custom_call.1} parent=1 // pred_check_branch
      %504 = sbr.rel (0) target = $region53
    $region52: #{tpu_custom_call.1} parent=1 // pred_region
      %505 = dma.done [#allocation4], 64
    $region53: #{tpu_custom_call.1} parent=1 // pred_fallthru
      _
    %506 = vsyncpa [#allocation3], 1
    %507 = vsyncpa [#allocation6], 1
    %508 = vsyncpa [#allocation9], 1
    %509 = vsyncpa [#allocation4], 1

</llo_original>
